<compile_context>
chip_gen: v7x
topology: tpu7x:2x2x1
jax: 0.10.0
libtpu: 0.0.40
codegen_flags: <defaults>
</compile_context>

<pallas_src>
import math

import jax
import jax.numpy as jnp
from jax.experimental import pallas as pl
from jax.experimental.pallas import tpu as pltpu


def _round_up(x: int, m: int) -> int:
    return (x + m - 1) // m * m


def _cdiv(a: int, b: int) -> int:
    return (a + b - 1) // b


# ----------------------------- Pallas kernel ------------------------------ #
def timestep_embedding_kernel(t_ref, freqs_ref, phase_ref, w1_ref, b1_ref,
                              w2_ref, b2_ref, o_ref, h_ref):
    # t_ref:     (TB, 1)       f32 timesteps (batch-row tile)
    # freqs_ref: (1, E)        f32 [f, f]       (resident)
    # phase_ref: (1, E)        f32 [0, pi/2]    (resident)
    # w1_ref:    (E, H_pad)    first dense weight, stored (in, out) (resident)
    # b1_ref:    (1, H_pad)    f32 (resident)
    # w2_ref:    (H_pad, TN)   second dense weight column tile
    # b2_ref:    (1, TN)       f32
    # o_ref:     (TB, TN)
    # h_ref:     (TB, H_pad)   f32 scratch: swish(temb @ w1 + b1), reused
    #                          across the output-column grid axis.

    # Hidden activation depends only on the batch tile -> compute once per
    # batch tile (first output-column step) and reuse for all column tiles.
    @pl.when(pl.program_id(1) == 0)
    def _():
        t = t_ref[...]                                      # (TB, 1) f32
        # Fused sinusoidal embedding: cos(x) == sin(x + pi/2), so a single
        # sin over (TB, E) covers both the sin- and cos-half of the lanes.
        arg = t * freqs_ref[...] + phase_ref[...]           # (TB, E)
        temb = jnp.sin(arg)                                 # (TB, E) f32

        # First dense (single MXU push, f32 accumulation) + Swish.
        h = (jnp.dot(temb.astype(w1_ref.dtype), w1_ref[...],
                     preferred_element_type=jnp.float32)
             + b1_ref[...].astype(jnp.float32))             # (TB, H_pad) f32
        # Swish: put the divide on the EUP (approx reciprocal); exp is EUP too.
        h_ref[...] = h * pl.reciprocal(1.0 + jnp.exp(-h), approx=True)

    # Second dense on the current output-column tile.
    h = h_ref[...]
    out = (jnp.dot(h.astype(w2_ref.dtype), w2_ref[...],
                   preferred_element_type=jnp.float32)
           + b2_ref[...].astype(jnp.float32))               # (TB, TN) f32
    o_ref[...] = out.astype(o_ref.dtype)


# --------------------- one-time parameter preparation ---------------------- #
def prepare_timestep_embedding_params(w1, b1, w2, b2, embedding_dim, *,
                                      weight_dtype=jnp.bfloat16,
                                      block_n=1024,
                                      resident_w2_bytes=16 << 20):
    """Pad (lane-dense) + cast weights ONCE, outside the per-step hot path.

    Weights are stored (in_features, out_features): forward is x @ W + b,
    equivalent to PyTorch's x @ W.T + b with W of shape (out, in).
    """
    assert embedding_dim % 2 == 0, "kernel assumes even embedding_dim"
    assert embedding_dim >= 4, "embedding_dim must be >= 4 (half-1 divisor)"
    E, H = w1.shape
    assert E == embedding_dim
    H2, O = w2.shape
    assert H2 == H and b1.shape == (H,) and b2.shape == (O,)

    H_pad = _round_up(H, 128)
    O_pad0 = _round_up(O, 128)
    itemsize = jnp.dtype(weight_dtype).itemsize

    # Stream w2 in output-column tiles only when it is too big to keep fully
    # resident (matters on v7x: 64 MiB VMEM per TensorCore).
    if H_pad * O_pad0 * itemsize <= resident_w2_bytes:
        n_n = 1
    else:
        n_n = _cdiv(O_pad0, _round_up(block_n, 128))
    TN = _round_up(_cdiv(O_pad0, n_n), 128)
    O_pad = TN * n_n

    # Zero padding is exact: padded hidden cols give swish(0)=0 and hit zero
    # w2 rows; padded output cols are sliced off.
    w1_p = jnp.pad(w1, ((0, 0), (0, H_pad - H))).astype(weight_dtype)
    b1_p = jnp.pad(b1, (0, H_pad - H)).reshape(1, H_pad).astype(jnp.float32)
    w2_p = jnp.pad(w2, ((0, H_pad - H), (0, O_pad - O))).astype(weight_dtype)
    b2_p = jnp.pad(b2, (0, O_pad - O)).reshape(1, O_pad).astype(jnp.float32)

    # Sinusoidal frequency / phase rows: embedding is sin(t*freqs + phase),
    # phase = pi/2 on the second half selects cos (matches concat([sin,cos])).
    half = E // 2
    scale = math.log(10000.0) / (half - 1)
    f_half = jnp.exp(jnp.arange(half, dtype=jnp.float32) * (-scale))
    freqs = jnp.concatenate([f_half, f_half]).reshape(1, E)
    phase = jnp.concatenate([jnp.zeros((half,), jnp.float32),
                             jnp.full((half,), 0.5 * math.pi, jnp.float32)]
                            ).reshape(1, E)

    return dict(w1=w1_p, b1=b1_p, w2=w2_p, b2=b2_p, freqs=freqs, phase=phase,
                E=E, H=H, O=O, H_pad=H_pad, O_pad=O_pad, TN=TN, n_n=n_n)


# ------------------------------- wrapper ----------------------------------- #
def timestep_embedding(timesteps, params, *, block_b: int = 256):
    """timesteps: (B,) int; params from prepare_timestep_embedding_params."""
    E, O = params["E"], params["O"]
    H_pad, TN, n_n = params["H_pad"], params["TN"], params["n_n"]
    O_pad = params["O_pad"]
    w1_p, b1_p = params["w1"], params["b1"]
    w2_p, b2_p = params["w2"], params["b2"]
    freqs, phase = params["freqs"], params["phase"]

    B = timesteps.shape[0]
    B8 = _round_up(max(B, 1), 8)
    # Batch tiling: minimize padding waste; ensure >= 2 grid steps for
    # moderately large batches so the 'parallel' axis can shard across both
    # TensorCores on dual-TC chips (v7x). Tiny batches stay single-tile
    # (weight-DMA-bound; sharding would duplicate the weight DMA).
    n_b = max(1, _cdiv(B8, block_b))
    if n_b == 1 and B8 >= 256:
        n_b = 2
    TB = _round_up(_cdiv(B8, n_b), 8)
    grid_b = _cdiv(B8, TB)
    B_pad = grid_b * TB

    t_col = jnp.pad(timesteps.astype(jnp.float32),
                    (0, B_pad - B)).reshape(B_pad, 1)

    # VMEM budget (bytes): resident weights (single-buffered), streamed w2
    # tiles (double-buffered when n_n > 1), double-buffered t/out tiles, and
    # the (TB, H_pad) f32 hidden-activation scratch.
    wbytes = jnp.dtype(w1_p.dtype).itemsize
    n_buf_w2 = 1 if n_n == 1 else 2
    need = (E * H_pad * wbytes + H_pad * 4 + 2 * E * 4
            + n_buf_w2 * (H_pad * TN * wbytes + TN * 4)
            + 2 * (TB * 4) + 2 * (TB * TN * 4)
            + TB * H_pad * 4)
    vmem_limit = int(min(max(need * 5 // 4 + (4 << 20), 32 << 20), 64 << 20))

    def _call(single_buffer_resident: bool):
        def resident_spec(shape):
            if single_buffer_resident:
                return pl.BlockSpec(shape, lambda i, n: (0, 0),
                                    pipeline_mode=pl.Buffered(1))
            return pl.BlockSpec(shape, lambda i, n: (0, 0))

        if n_n == 1 and single_buffer_resident:
            # w2/b2 never change -> single-buffer them too.
            w2_spec = pl.BlockSpec((H_pad, TN), lambda i, n: (0, n),
                                   pipeline_mode=pl.Buffered(1))
            b2_spec = pl.BlockSpec((1, TN), lambda i, n: (0, n),
                                   pipeline_mode=pl.Buffered(1))
        else:
            w2_spec = pl.BlockSpec((H_pad, TN), lambda i, n: (0, n))
            b2_spec = pl.BlockSpec((1, TN), lambda i, n: (0, n))

        return pl.pallas_call(
            timestep_embedding_kernel,
            out_shape=jax.ShapeDtypeStruct((B_pad, O_pad), jnp.float32),
            grid_spec=pltpu.PrefetchScalarGridSpec(
                num_scalar_prefetch=0,
                grid=(grid_b, n_n),
                in_specs=[
                    pl.BlockSpec((TB, 1), lambda i, n: (i, 0)),  # timesteps
                    resident_spec((1, E)),                       # freqs
                    resident_spec((1, E)),                       # phase
                    resident_spec((E, H_pad)),                   # w1
                    resident_spec((1, H_pad)),                   # b1
                    w2_spec,                                     # w2 tile
                    b2_spec,                                     # b2 tile
                ],
                out_specs=pl.BlockSpec((TB, TN), lambda i, n: (i, n)),
                scratch_shapes=[pltpu.VMEM((TB, H_pad), jnp.float32)],
            ),
            compiler_params=pltpu.CompilerParams(
                dimension_semantics=("parallel", "arbitrary"),
                vmem_limit_bytes=vmem_limit),
        )(t_col, freqs, phase, w1_p, b1_p, w2_p, b2_p)

    try:
        out = _call(True)
    except Exception:
        # pipeline_mode=pl.Buffered(1) unsupported on this jax/libtpu combo:
        # fall back to default double-buffering of the resident inputs.
        out = _call(False)

    return out[:B, :O]


# ----------------------- deterministic parameter init ---------------------- #
def variance_scaling_uniform(key, fan_in, fan_out, scale=1.0):
    # matches variance_scaling_init_ with mode='fan_avg':
    # bound = sqrt(3 * scale / fan_avg)
    fan_avg = (fan_in + fan_out) / 2.0
    bound = math.sqrt(3.0 * scale / max(1.0, fan_avg))
    # weight stored as (in, out) -> forward is x @ W + b
    return jax.random.uniform(key, (fan_in, fan_out), jnp.float32,
                              minval=-bound, maxval=bound)


def reference_forward(timesteps, w1, b1, w2, b2, embedding_dim):
    """Pure-JAX reference matching the PyTorch module exactly."""
    t = timesteps.astype(jnp.float32)
    half = embedding_dim // 2
    emb = math.log(10000.0) / (half - 1)
    freqs = jnp.exp(jnp.arange(half, dtype=jnp.float32) * -emb)
    e = t[:, None] * freqs[None, :]
    temb = jnp.concatenate([jnp.sin(e), jnp.cos(e)], axis=1)
    h = temb @ w1 + b1
    h = jax.nn.sigmoid(h) * h
    return h @ w2 + b2


# --------------------------------- main ------------------------------------ #
if __name__ == "__main__":
    embedding_dim = 32
    hidden_dim = 64
    output_dim = 32

    key = jax.random.PRNGKey(0)
    k_t, k_t2, k_w1, k_w2 = jax.random.split(key, 4)

    w1 = variance_scaling_uniform(k_w1, embedding_dim, hidden_dim, scale=1.0)
    b1 = jnp.zeros((hidden_dim,), jnp.float32)
    w2 = variance_scaling_uniform(k_w2, hidden_dim, output_dim, scale=1.0)
    b2 = jnp.zeros((output_dim,), jnp.float32)

    # --- test 1: f32 weights, single batch tile ---------------------------- #
    batch = 8
    timesteps = jax.random.randint(k_t, (batch,), 0, 1000)
    params_f32 = prepare_timestep_embedding_params(
        w1, b1, w2, b2, embedding_dim, weight_dtype=jnp.float32)
    out = jax.block_until_ready(timestep_embedding(timesteps, params_f32))
    ref = reference_forward(timesteps, w1, b1, w2, b2, embedding_dim)
    assert out.shape == (batch, output_dim)
    assert jnp.allclose(out, ref, rtol=5e-3, atol=5e-3), "f32 mismatch vs ref"

    # --- test 2: bf16 weights (MXU fast path), multi-tile batch grid ------- #
    batch2 = 40
    timesteps2 = jax.random.randint(k_t2, (batch2,), 0, 1000)
    params_bf16 = prepare_timestep_embedding_params(
        w1, b1, w2, b2, embedding_dim, weight_dtype=jnp.bfloat16)
    out2 = jax.block_until_ready(
        timestep_embedding(timesteps2, params_bf16, block_b=16))
    ref2 = reference_forward(timesteps2, w1, b1, w2, b2, embedding_dim)
    assert out2.shape == (batch2, output_dim)
    assert jnp.allclose(out2, ref2, rtol=5e-2, atol=5e-2), "bf16 mismatch vs ref"

    print("KERNEL_OK")
</pallas_src>

<mosaic_0001>
module attributes {stable_mosaic.version = 11 : i64} {
  func.func @timestep_embedding_kernel(%arg0: i32, %arg1: i32, %arg2: memref<8x1xf32, #tpu.memory_space<vmem>>, %arg3: memref<1x32xf32, #tpu.memory_space<vmem>>, %arg4: memref<1x32xf32, #tpu.memory_space<vmem>>, %arg5: memref<32x128xf32, #tpu.memory_space<vmem>>, %arg6: memref<1x128xf32, #tpu.memory_space<vmem>>, %arg7: memref<128x128xf32, #tpu.memory_space<vmem>>, %arg8: memref<1x128xf32, #tpu.memory_space<vmem>>, %arg9: memref<8x128xf32, #tpu.memory_space<vmem>>, %arg10: memref<8x128xf32, #tpu.memory_space<vmem>>) attributes {dimension_semantics = [#tpu.dimension_semantics<parallel>, #tpu.dimension_semantics<arbitrary>], iteration_bounds = array<i64: 1, 1>, scalar_prefetch = 0 : i64, scratch_operands = 1 : i64, tpu.core_type = #tpu.core_type<tc>, window_params = [{transform_indices = @transform_0, window_bounds = array<i64: 8, 1>}, {pipeline_mode = #tpu.pipeline_mode<synchronous>, transform_indices = @transform_1, window_bounds = array<i64: 1, 32>}, {pipeline_mode = #tpu.pipeline_mode<synchronous>, transform_indices = @transform_2, window_bounds = array<i64: 1, 32>}, {pipeline_mode = #tpu.pipeline_mode<synchronous>, transform_indices = @transform_3, window_bounds = array<i64: 32, 128>}, {pipeline_mode = #tpu.pipeline_mode<synchronous>, transform_indices = @transform_4, window_bounds = array<i64: 1, 128>}, {pipeline_mode = #tpu.pipeline_mode<synchronous>, transform_indices = @transform_5, window_bounds = array<i64: 128, 128>}, {pipeline_mode = #tpu.pipeline_mode<synchronous>, transform_indices = @transform_6, window_bounds = array<i64: 1, 128>}, {transform_indices = @transform_7, window_bounds = array<i64: 8, 128>}]} {
    %c0_i32 = arith.constant 0 : i32
    %0 = arith.cmpi eq, %arg1, %c0_i32 : i32
    %1 = arith.extui %0 : i1 to i32
    %c0_i32_0 = arith.constant 0 : i32
    %2 = arith.cmpi ne, %1, %c0_i32_0 : i32
    scf.if %2 {
      %c0_8 = arith.constant 0 : index
      %c0_9 = arith.constant 0 : index
      %10 = vector.load %arg2[%c0_8, %c0_9] : memref<8x1xf32, #tpu.memory_space<vmem>>, vector<8x1xf32>
      %c0_10 = arith.constant 0 : index
      %c0_11 = arith.constant 0 : index
      %11 = vector.load %arg3[%c0_10, %c0_11] : memref<1x32xf32, #tpu.memory_space<vmem>>, vector<1x32xf32>
      %12 = vector.broadcast %10 : vector<8x1xf32> to vector<8x32xf32>
      %13 = vector.broadcast %11 : vector<1x32xf32> to vector<8x32xf32>
      %14 = arith.mulf %12, %13 : vector<8x32xf32>
      %c0_12 = arith.constant 0 : index
      %c0_13 = arith.constant 0 : index
      %15 = vector.load %arg4[%c0_12, %c0_13] : memref<1x32xf32, #tpu.memory_space<vmem>>, vector<1x32xf32>
      %16 = vector.broadcast %15 : vector<1x32xf32> to vector<8x32xf32>
      %17 = arith.addf %14, %16 : vector<8x32xf32>
      %18 = math.sin %17 : vector<8x32xf32>
      %c0_14 = arith.constant 0 : index
      %c0_15 = arith.constant 0 : index
      %19 = vector.load %arg5[%c0_14, %c0_15] : memref<32x128xf32, #tpu.memory_space<vmem>>, vector<32x128xf32>
      %cst_16 = arith.constant dense<0.000000e+00> : vector<8x128xf32>
      %20 = tpu.matmul %18, %19, %cst_16 {dimension_numbers = #tpu.dot_dimension_numbers<[1], [0], [0], [1], [0, 0, 1, 1], [], []>} : vector<8x32xf32>, vector<32x128xf32>, vector<8x128xf32> -> vector<8x128xf32>
      %c0_17 = arith.constant 0 : index
      %c0_18 = arith.constant 0 : index
      %21 = vector.load %arg6[%c0_17, %c0_18] : memref<1x128xf32, #tpu.memory_space<vmem>>, vector<1x128xf32>
      %22 = vector.broadcast %21 : vector<1x128xf32> to vector<8x128xf32>
      %23 = arith.addf %20, %22 : vector<8x128xf32>
      %cst_19 = arith.constant 0.000000e+00 : f32
      %24 = vector.broadcast %cst_19 : f32 to vector<8x128xf32>
      %25 = arith.subf %24, %23 : vector<8x128xf32>
      %26 = math.exp %25 : vector<8x128xf32>
      %cst_20 = arith.constant 1.000000e+00 : f32
      %27 = vector.broadcast %cst_20 : f32 to vector<8x128xf32>
      %28 = arith.addf %27, %26 : vector<8x128xf32>
      %29 = tpu.reciprocal %28 {approx = true} : vector<8x128xf32> -> vector<8x128xf32>
      %30 = arith.mulf %23, %29 : vector<8x128xf32>
      %c0_21 = arith.constant 0 : index
      %c0_22 = arith.constant 0 : index
      %31 = vector.load %arg10[%c0_21, %c0_22] : memref<8x128xf32, #tpu.memory_space<vmem>>, vector<8x128xf32>
      tpu.vector_store %arg10[%c0_21, %c0_22], %30 {strides = array<i32>} : memref<8x128xf32, #tpu.memory_space<vmem>>, vector<8x128xf32>,
    } else {
    }
    %c0 = arith.constant 0 : index
    %c0_1 = arith.constant 0 : index
    %3 = vector.load %arg10[%c0, %c0_1] : memref<8x128xf32, #tpu.memory_space<vmem>>, vector<8x128xf32>
    %c0_2 = arith.constant 0 : index
    %c0_3 = arith.constant 0 : index
    %4 = vector.load %arg7[%c0_2, %c0_3] : memref<128x128xf32, #tpu.memory_space<vmem>>, vector<128x128xf32>
    %cst = arith.constant dense<0.000000e+00> : vector<8x128xf32>
    %5 = tpu.matmul %3, %4, %cst {dimension_numbers = #tpu.dot_dimension_numbers<[1], [0], [0], [1], [0, 0, 1, 1], [], []>} : vector<8x128xf32>, vector<128x128xf32>, vector<8x128xf32> -> vector<8x128xf32>
    %c0_4 = arith.constant 0 : index
    %c0_5 = arith.constant 0 : index
    %6 = vector.load %arg8[%c0_4, %c0_5] : memref<1x128xf32, #tpu.memory_space<vmem>>, vector<1x128xf32>
    %7 = vector.broadcast %6 : vector<1x128xf32> to vector<8x128xf32>
    %8 = arith.addf %5, %7 : vector<8x128xf32>
    %c0_6 = arith.constant 0 : index
    %c0_7 = arith.constant 0 : index
    %9 = vector.load %arg9[%c0_6, %c0_7] : memref<8x128xf32, #tpu.memory_space<vmem>>, vector<8x128xf32>
    tpu.vector_store %arg9[%c0_6, %c0_7], %8 {strides = array<i32>} : memref<8x128xf32, #tpu.memory_space<vmem>>, vector<8x128xf32>,
    return
  }
  func.func @transform_0(%arg0: i32, %arg1: i32) -> (i32, i32) {
    %c0_i32 = arith.constant 0 : i32
    %c0_i32_0 = arith.constant 0 : i32
    return %arg0, %c0_i32 : i32, i32
  }
  func.func @transform_1(%arg0: i32, %arg1: i32) -> (i32, i32) {
    %c0_i32 = arith.constant 0 : i32
    %c0_i32_0 = arith.constant 0 : i32
    %c0_i32_1 = arith.constant 0 : i32
    return %c0_i32, %c0_i32_0 : i32, i32
  }
  func.func @transform_2(%arg0: i32, %arg1: i32) -> (i32, i32) {
    %c0_i32 = arith.constant 0 : i32
    %c0_i32_0 = arith.constant 0 : i32
    %c0_i32_1 = arith.constant 0 : i32
    return %c0_i32, %c0_i32_0 : i32, i32
  }
  func.func @transform_3(%arg0: i32, %arg1: i32) -> (i32, i32) {
    %c0_i32 = arith.constant 0 : i32
    %c0_i32_0 = arith.constant 0 : i32
    %c0_i32_1 = arith.constant 0 : i32
    return %c0_i32, %c0_i32_0 : i32, i32
  }
  func.func @transform_4(%arg0: i32, %arg1: i32) -> (i32, i32) {
    %c0_i32 = arith.constant 0 : i32
    %c0_i32_0 = arith.constant 0 : i32
    %c0_i32_1 = arith.constant 0 : i32
    return %c0_i32, %c0_i32_0 : i32, i32
  }
  func.func @transform_5(%arg0: i32, %arg1: i32) -> (i32, i32) {
    %c0_i32 = arith.constant 0 : i32
    %c0_i32_0 = arith.constant 0 : i32
    return %c0_i32, %arg1 : i32, i32
  }
  func.func @transform_6(%arg0: i32, %arg1: i32) -> (i32, i32) {
    %c0_i32 = arith.constant 0 : i32
    %c0_i32_0 = arith.constant 0 : i32
    return %c0_i32, %arg1 : i32, i32
  }
  func.func @transform_7(%arg0: i32, %arg1: i32) -> (i32, i32) {
    %c0_i32 = arith.constant 0 : i32
    return %arg0, %arg1 : i32, i32
  }
}

module attributes {stable_mosaic.version = 11 : i64} {
  func.func @timestep_embedding_kernel(%arg0: i32, %arg1: i32, %arg2: memref<8x1xf32, #tpu.memory_space<vmem>>, %arg3: memref<1x32xf32, #tpu.memory_space<vmem>>, %arg4: memref<1x32xf32, #tpu.memory_space<vmem>>, %arg5: memref<32x128xf32, #tpu.memory_space<vmem>>, %arg6: memref<1x128xf32, #tpu.memory_space<vmem>>, %arg7: memref<128x128xf32, #tpu.memory_space<vmem>>, %arg8: memref<1x128xf32, #tpu.memory_space<vmem>>, %arg9: memref<8x128xf32, #tpu.memory_space<vmem>>, %arg10: memref<8x128xf32, #tpu.memory_space<vmem>>) attributes {dimension_semantics = [#tpu.dimension_semantics<parallel>, #tpu.dimension_semantics<arbitrary>], iteration_bounds = array<i64: 1, 1>, scalar_prefetch = 0 : i64, scratch_operands = 1 : i64, tpu.core_type = #tpu.core_type<tc>, window_params = [{transform_indices = @transform_0, window_bounds = array<i64: 8, 1>}, {pipeline_mode = #tpu.pipeline_mode<synchronous>, transform_indices = @transform_1, window_bounds = array<i64: 1, 32>}, {pipeline_mode = #tpu.pipeline_mode<synchronous>, transform_indices = @transform_2, window_bounds = array<i64: 1, 32>}, {pipeline_mode = #tpu.pipeline_mode<synchronous>, transform_indices = @transform_3, window_bounds = array<i64: 32, 128>}, {pipeline_mode = #tpu.pipeline_mode<synchronous>, transform_indices = @transform_4, window_bounds = array<i64: 1, 128>}, {transform_indices = @transform_5, window_bounds = array<i64: 128, 128>}, {transform_indices = @transform_6, window_bounds = array<i64: 1, 128>}, {transform_indices = @transform_7, window_bounds = array<i64: 8, 128>}]} {
    %c0_i32 = arith.constant 0 : i32
    %0 = arith.cmpi eq, %arg1, %c0_i32 : i32
    %1 = arith.extui %0 : i1 to i32
    %c0_i32_0 = arith.constant 0 : i32
    %2 = arith.cmpi ne, %1, %c0_i32_0 : i32
    scf.if %2 {
      %c0_8 = arith.constant 0 : index
      %c0_9 = arith.constant 0 : index
      %10 = vector.load %arg2[%c0_8, %c0_9] : memref<8x1xf32, #tpu.memory_space<vmem>>, vector<8x1xf32>
      %c0_10 = arith.constant 0 : index
      %c0_11 = arith.constant 0 : index
      %11 = vector.load %arg3[%c0_10, %c0_11] : memref<1x32xf32, #tpu.memory_space<vmem>>, vector<1x32xf32>
      %12 = vector.broadcast %10 : vector<8x1xf32> to vector<8x32xf32>
      %13 = vector.broadcast %11 : vector<1x32xf32> to vector<8x32xf32>
      %14 = arith.mulf %12, %13 : vector<8x32xf32>
      %c0_12 = arith.constant 0 : index
      %c0_13 = arith.constant 0 : index
      %15 = vector.load %arg4[%c0_12, %c0_13] : memref<1x32xf32, #tpu.memory_space<vmem>>, vector<1x32xf32>
      %16 = vector.broadcast %15 : vector<1x32xf32> to vector<8x32xf32>
      %17 = arith.addf %14, %16 : vector<8x32xf32>
      %18 = math.sin %17 : vector<8x32xf32>
      %c0_14 = arith.constant 0 : index
      %c0_15 = arith.constant 0 : index
      %19 = vector.load %arg5[%c0_14, %c0_15] : memref<32x128xf32, #tpu.memory_space<vmem>>, vector<32x128xf32>
      %cst_16 = arith.constant dense<0.000000e+00> : vector<8x128xf32>
      %20 = tpu.matmul %18, %19, %cst_16 {dimension_numbers = #tpu.dot_dimension_numbers<[1], [0], [0], [1], [0, 0, 1, 1], [], []>} : vector<8x32xf32>, vector<32x128xf32>, vector<8x128xf32> -> vector<8x128xf32>
      %c0_17 = arith.constant 0 : index
      %c0_18 = arith.constant 0 : index
      %21 = vector.load %arg6[%c0_17, %c0_18] : memref<1x128xf32, #tpu.memory_space<vmem>>, vector<1x128xf32>
      %22 = vector.broadcast %21 : vector<1x128xf32> to vector<8x128xf32>
      %23 = arith.addf %20, %22 : vector<8x128xf32>
      %cst_19 = arith.constant 0.000000e+00 : f32
      %24 = vector.broadcast %cst_19 : f32 to vector<8x128xf32>
      %25 = arith.subf %24, %23 : vector<8x128xf32>
      %26 = math.exp %25 : vector<8x128xf32>
      %cst_20 = arith.constant 1.000000e+00 : f32
      %27 = vector.broadcast %cst_20 : f32 to vector<8x128xf32>
      %28 = arith.addf %27, %26 : vector<8x128xf32>
      %29 = tpu.reciprocal %28 {approx = true} : vector<8x128xf32> -> vector<8x128xf32>
      %30 = arith.mulf %23, %29 : vector<8x128xf32>
      %c0_21 = arith.constant 0 : index
      %c0_22 = arith.constant 0 : index
      %31 = vector.load %arg10[%c0_21, %c0_22] : memref<8x128xf32, #tpu.memory_space<vmem>>, vector<8x128xf32>
      tpu.vector_store %arg10[%c0_21, %c0_22], %30 {strides = array<i32>} : memref<8x128xf32, #tpu.memory_space<vmem>>, vector<8x128xf32>,
    } else {
    }
    %c0 = arith.constant 0 : index
    %c0_1 = arith.constant 0 : index
    %3 = vector.load %arg10[%c0, %c0_1] : memref<8x128xf32, #tpu.memory_space<vmem>>, vector<8x128xf32>
    %c0_2 = arith.constant 0 : index
    %c0_3 = arith.constant 0 : index
    %4 = vector.load %arg7[%c0_2, %c0_3] : memref<128x128xf32, #tpu.memory_space<vmem>>, vector<128x128xf32>
    %cst = arith.constant dense<0.000000e+00> : vector<8x128xf32>
    %5 = tpu.matmul %3, %4, %cst {dimension_numbers = #tpu.dot_dimension_numbers<[1], [0], [0], [1], [0, 0, 1, 1], [], []>} : vector<8x128xf32>, vector<128x128xf32>, vector<8x128xf32> -> vector<8x128xf32>
    %c0_4 = arith.constant 0 : index
    %c0_5 = arith.constant 0 : index
    %6 = vector.load %arg8[%c0_4, %c0_5] : memref<1x128xf32, #tpu.memory_space<vmem>>, vector<1x128xf32>
    %7 = vector.broadcast %6 : vector<1x128xf32> to vector<8x128xf32>
    %8 = arith.addf %5, %7 : vector<8x128xf32>
    %c0_6 = arith.constant 0 : index
    %c0_7 = arith.constant 0 : index
    %9 = vector.load %arg9[%c0_6, %c0_7] : memref<8x128xf32, #tpu.memory_space<vmem>>, vector<8x128xf32>
    tpu.vector_store %arg9[%c0_6, %c0_7], %8 {strides = array<i32>} : memref<8x128xf32, #tpu.memory_space<vmem>>, vector<8x128xf32>,
    return
  }
  func.func @transform_0(%arg0: i32, %arg1: i32) -> (i32, i32) {
    %c0_i32 = arith.constant 0 : i32
    %c0_i32_0 = arith.constant 0 : i32
    return %arg0, %c0_i32 : i32, i32
  }
  func.func @transform_1(%arg0: i32, %arg1: i32) -> (i32, i32) {
    %c0_i32 = arith.constant 0 : i32
    %c0_i32_0 = arith.constant 0 : i32
    %c0_i32_1 = arith.constant 0 : i32
    return %c0_i32, %c0_i32_0 : i32, i32
  }
  func.func @transform_2(%arg0: i32, %arg1: i32) -> (i32, i32) {
    %c0_i32 = arith.constant 0 : i32
    %c0_i32_0 = arith.constant 0 : i32
    %c0_i32_1 = arith.constant 0 : i32
    return %c0_i32, %c0_i32_0 : i32, i32
  }
  func.func @transform_3(%arg0: i32, %arg1: i32) -> (i32, i32) {
    %c0_i32 = arith.constant 0 : i32
    %c0_i32_0 = arith.constant 0 : i32
    %c0_i32_1 = arith.constant 0 : i32
    return %c0_i32, %c0_i32_0 : i32, i32
  }
  func.func @transform_4(%arg0: i32, %arg1: i32) -> (i32, i32) {
    %c0_i32 = arith.constant 0 : i32
    %c0_i32_0 = arith.constant 0 : i32
    %c0_i32_1 = arith.constant 0 : i32
    return %c0_i32, %c0_i32_0 : i32, i32
  }
  func.func @transform_5(%arg0: i32, %arg1: i32) -> (i32, i32) {
    %c0_i32 = arith.constant 0 : i32
    %c0_i32_0 = arith.constant 0 : i32
    return %c0_i32, %arg1 : i32, i32
  }
  func.func @transform_6(%arg0: i32, %arg1: i32) -> (i32, i32) {
    %c0_i32 = arith.constant 0 : i32
    %c0_i32_0 = arith.constant 0 : i32
    return %c0_i32, %arg1 : i32, i32
  }
  func.func @transform_7(%arg0: i32, %arg1: i32) -> (i32, i32) {
    %c0_i32 = arith.constant 0 : i32
    return %arg0, %arg1 : i32, i32
  }
}

</mosaic_0001>

<llo_original>
// kernel: tpu_custom_call.1
$region0: #{tpu_custom_call.1}
  #allocation0 [shape = 'u32[]', space=smem, size = 0x4, offset = 0x4, fixed_abs, tag = 'smem constant byte address 0x4 - core index']
  #allocation1 [shape = 'u32[144,128]{1,0:T(1,128)}', space=vmem, size = 0x12000, scoped, tag = 'internal scratch']
  #allocation2 [shape = 'f32[8,128]{1,0:T(8,128)}', space=vmem, size = 0x1000, scoped, tag = 'scratch operand']
  %s0 = inlined_call_operand.vmem [shape: f32[8,1], index: 0, kind: input, shape index: {}]
  %s1 = inlined_call_operand.vmem [shape: f32[1,32], index: 1, kind: input, shape index: {}]
  %s2 = inlined_call_operand.vmem [shape: f32[1,32], index: 2, kind: input, shape index: {}]
  %s3 = inlined_call_operand.hbm [shape: f32[32,128], index: 3, kind: input, shape index: {}]
  %s4 = inlined_call_operand.vmem [shape: f32[1,128], index: 4, kind: input, shape index: {}]
  %s5 = inlined_call_operand.hbm [shape: f32[128,128], index: 5, kind: input, shape index: {}]
  %s6 = inlined_call_operand.vmem [shape: f32[1,128], index: 6, kind: input, shape index: {}]
  %s7 = inlined_call_operand.hbm [shape: f32[8,128], index: 7, kind: output, shape index: {}]
  %s8 = sld [smem:[#allocation0]]
  $region50: #{tpu_custom_call.1} parent=0
    _
  %s10 = ssub.s32 1, %s8
  %s11 = scalar_select 0, %s10, %s8
  $region1: #{tpu_custom_call.1} parent=0
    #allocation3 [shape = 'u8[16384]{0}', space=vmem, size = 0x4000, scoped, tag = 'input window, operand 3, single buffered']
    #allocation4 [shape = 's32[1]{0}', space=sflag, size = 0x4, scoped, tag = 'scoped memory for tpu_custom_call.1']
    #allocation5 [shape = 's32[1]{0}', space=sflag, size = 0x4, scoped, tag = 'scoped memory for tpu_custom_call.1']
    #allocation6 [shape = 'u8[65536]{0}', space=vmem, size = 0x10000, scoped, tag = 'input window, operand 5, single buffered']
    #allocation7 [shape = 's32[1]{0}', space=sflag, size = 0x4, scoped, tag = 'scoped memory for tpu_custom_call.1']
    #allocation8 [shape = 'u8[4096]{0}', space=vmem, size = 0x1000, scoped, tag = 'output window, operand 0, single buffered']
    %12 = vsyncpa [#allocation4], 0
    %13 = vsyncpa [#allocation7], 0
    %14 = vsyncpa [#allocation5], 0
    // Predicated region
    $region2: #{tpu_custom_call.1} parent=1 // pred_check
      _
    $region3: #{tpu_custom_call.1} parent=1 // pred_check_branch
      %16 = sbr.rel (0) target = $region5
    $region4: #{tpu_custom_call.1} parent=1 // pred_region
      _
    $region5: #{tpu_custom_call.1} parent=1 // pred_fallthru
      _
    // Predicated region
    $region6: #{tpu_custom_call.1} parent=1 // pred_check
      _
    $region7: #{tpu_custom_call.1} parent=1 // pred_check_branch
      %18 = sbr.rel (0) target = $region9
    $region8: #{tpu_custom_call.1} parent=1 // pred_region
      _
    $region9: #{tpu_custom_call.1} parent=1 // pred_fallthru
      _
    // Predicated region
    $region10: #{tpu_custom_call.1} parent=1 // pred_check
      _
    $region11: #{tpu_custom_call.1} parent=1 // pred_check_branch
      %20 = sbr.rel (0) target = $region13
    $region12: #{tpu_custom_call.1} parent=1 // pred_region
      _
    $region13: #{tpu_custom_call.1} parent=1 // pred_fallthru
      _
    // Predicated region
    $region14: #{tpu_custom_call.1} parent=1 // pred_check
      _
    $region15: #{tpu_custom_call.1} parent=1 // pred_check_branch
      %22 = sbr.rel (0) target = $region17
    $region16: #{tpu_custom_call.1} parent=1 // pred_region
      %s24 = ssub.s32 512, 512
      %25 = vsyncadd [#allocation4], %s24
      %s26 = sshll.u32 [#allocation3], 4
      %s27 = int_to_ptr.vmem [resolvable:$true] %s26
      %32 = dma.hbm_to_vmem [thread:$0]  %s3, 512, %s27, [#allocation4], 128, 128, 8
    $region17: #{tpu_custom_call.1} parent=1 // pred_fallthru
      _
    // Predicated region
    $region18: #{tpu_custom_call.1} parent=1 // pred_check
      _
    $region19: #{tpu_custom_call.1} parent=1 // pred_check_branch
      %34 = sbr.rel (0) target = $region21
    $region20: #{tpu_custom_call.1} parent=1 // pred_region
      _
    $region21: #{tpu_custom_call.1} parent=1 // pred_fallthru
      _
    // Predicated region
    $region22: #{tpu_custom_call.1} parent=1 // pred_check
      _
    $region23: #{tpu_custom_call.1} parent=1 // pred_check_branch
      %36 = sbr.rel (0) target = $region25
    $region24: #{tpu_custom_call.1} parent=1 // pred_region
      %s38 = ssub.s32 2048, 2048
      %39 = vsyncadd [#allocation7], %s38
      %s40 = sshll.u32 [#allocation6], 4
      %s41 = int_to_ptr.vmem [resolvable:$true] %s40
      %46 = dma.hbm_to_vmem [thread:$0]  %s5, 2048, %s41, [#allocation7], 128, 128, 8
    $region25: #{tpu_custom_call.1} parent=1 // pred_fallthru
      _
    // Predicated region
    $region26: #{tpu_custom_call.1} parent=1 // pred_check
      _
    $region27: #{tpu_custom_call.1} parent=1 // pred_check_branch
      %48 = sbr.rel (0) target = $region29
    $region28: #{tpu_custom_call.1} parent=1 // pred_region
      _
    $region29: #{tpu_custom_call.1} parent=1 // pred_fallthru
      _
    // Predicated region
    $region30: #{tpu_custom_call.1} parent=1 // pred_check
      _
    $region31: #{tpu_custom_call.1} parent=1 // pred_check_branch
      %50 = sbr.rel (0) target = $region33
    $region32: #{tpu_custom_call.1} parent=1 // pred_region
      %51 = dma.done [#allocation4], 512
    $region33: #{tpu_custom_call.1} parent=1 // pred_fallthru
      _
    // Predicated region
    $region34: #{tpu_custom_call.1} parent=1 // pred_check
      _
    $region35: #{tpu_custom_call.1} parent=1 // pred_check_branch
      %53 = sbr.rel (0) target = $region37
    $region36: #{tpu_custom_call.1} parent=1 // pred_region
      %54 = dma.done [#allocation7], 2048
    $region37: #{tpu_custom_call.1} parent=1 // pred_fallthru
      _
    %p55 = scmp.eq.s32.totalorder 0, 0
    // Predicated region
    $region38: #{tpu_custom_call.1} parent=1 // pred_check
      %p56 = pneg %p55
    $region39: #{tpu_custom_call.1} parent=1 // pred_check_branch
      %58 = sbr.rel (%p56) target = $region41
    $region40: #{tpu_custom_call.1} parent=1 // pred_region
      %v59 = vld [vmem:[%s0] sm:$0xff]
      %v60 = vld [vmem:[%s1] sm:$0x1]
      %62 = vset.pattern.permute.xlu0 0
      %63 = vperm.xlu0 %62, %v59
      %v64 = vpop.permute.xlu0 %63
      %v67 = vlaneseq
      %v68 = vshrl.u32 %v67, 7
      %v69 = vsub.s32 0, %v68
      %v70 = vrot.slane %v60, %v69
      %v72 = vmul.f32 %v64, %v70
      %v73 = vld [vmem:[%s2] sm:$0x1]
      %v75 = vlaneseq
      %v76 = vshrl.u32 %v75, 7
      %v77 = vsub.s32 0, %v76
      %v78 = vrot.slane %v73, %v77
      %v80 = vadd.f32 %v72, %v78
      %v81 = vand.u32 2147483647, %v80
      %vm82 = vcmp.le.f32.partialorder %v81, 0.7853982
      %vm83 = vcmp.lt.s32.totalorder %v80, 0
      %v84 = vand.u32 %v80, 2139095040
      %v85 = vshrl.u32 %v84, 23
      %v86 = vsub.s32 %v85, 127
      %v87 = vand.u32 2147483647, %v80
      %v88 = vand.u32 %v87, 8388607
      %v89 = vor.u32 %v88, 8388608
      %v90 = vsub.s32 0, %v89
      %v91 = vadd.s32 %v86, 1
      %vm92 = vcmp.gt.s32.totalorder %v91, 0
      %v93 = vsel %vm92, %v91, 0
      %v94 = vshrl.u32 %v93, 5
      %v95 = vand.u32 %v93, 31
      %v96 = vsub.s32 32, %v95
      %v97 = vshrl.u32 683565275, %v96
      %v98 = vshll.u32 683565275, %v95
      %v99 = vshrl.u32 2475754826, %v96
      %v100 = vor.u32 %v98, %v99
      %v101 = vshll.u32 2475754826, %v95
      %v102 = vshrl.u32 2131351028, %v96
      %v103 = vor.u32 %v101, %v102
      %v104 = vshll.u32 2131351028, %v95
      %v105 = vshrl.u32 2102212464, %v96
      %v106 = vor.u32 %v104, %v105
      %v107 = vshll.u32 2102212464, %v95
      %v108 = vshrl.u32 920167782, %v96
      %v109 = vor.u32 %v107, %v108
      %v110 = vshll.u32 920167782, %v95
      %v111 = vshrl.u32 1326507024, %v96
      %v112 = vor.u32 %v110, %v111
      %vm113 = vcmp.lt.s32.totalorder %v94, 1
      %vm114 = vcmp.lt.s32.totalorder %v94, 2
      %vm115 = vcmp.lt.s32.totalorder %v94, 3
      %vm116 = vcmp.lt.s32.totalorder %v94, 4
      %v117 = vsel %vm113, %v97, %v100
      %v118 = vsel %vm116, %v106, 2102212464
      %v119 = vsel %vm115, %v103, %v118
      %v120 = vsel %vm114, %v117, %v119
      %v121 = vsel %vm113, %v100, %v103
      %v122 = vsel %vm116, %v109, 920167782
      %v123 = vsel %vm115, %v106, %v122
      %v124 = vsel %vm114, %v121, %v123
      %v125 = vsel %vm113, %v103, %v106
      %v126 = vsel %vm116, %v112, 1326507024
      %v127 = vsel %vm115, %v109, %v126
      %v128 = vsel %vm114, %v125, %v127
      %v129 = vshll.u32 %v89, 8
      %v130 = vmul.u32.u64.compose %v129, %v128
      %v131 = vextract.low.u32 %v130
      %v132 = vextract.high.u32 %v130
      %v133 = vmul.u32.u64.compose %v129, %v124
      %v134 = vextract.low.u32 %v133
      %v135 = vextract.high.u32 %v133
      %v136 = vmul.u32 %v129, %v120
      %v137 = vadd.s32 %v132, %v134
      %vm138 = vc.u32 %v132, %v134
      %v139 = vadd.s32 %v135, 1
      %v140 = vsel %vm138, %v139, %v135
      %v141 = vadd.s32 %v136, %v140
      %v142 = vadd.s32 %v141, 536870912
      %v143 = vshrl.u32 %v142, 30
      %v144 = vshll.u32 %v143, 30
      %v145 = vsub.s32 %v141, %v144
      %vm146 = vcmp.lt.s32.totalorder %v145, 0
      %v147 = vsub.s32 0, %v145
      %v148 = vsel %vm146, %v147, %v145
      %v149 = vclz %v148
      %v150 = vsub.s32 %v149, 2
      %vm151 = vcmp.gt.s32.totalorder 0, %v150
      %v152 = vsel %vm151, 0, %v150
      %v153 = vsub.s32 32, %v152
      %v154 = vshll.u32 %v145, %v152
      %v155 = vshrl.u32 %v137, %v153
      %v156 = vor.u32 %v154, %v155
      %v157 = vsub.s32 4294967266, %v152
      %v158 = vadd.s32 %v157, 127
      %v159 = vshll.u32 %v158, 23
      %v160 = vor.u32 4788187, %v159
      %v161 = vand.u32 2147483647, %v160
      %v163 = vcvt.s32.f32 %v156
      %v164 = vmul.f32 %v163, %v161
      %v165 = vxor.u32 %v164, 2147483648
      %v166 = vsel %vm83, %v165, %v164
      %v167 = vsub.s32 4, %v143
      %v168 = vsel %vm83, %v167, %v143
      %v169 = vsel %vm82, %v80, %v166
      %v170 = vsel %vm82, 0, %v168
      %v171 = vcosq.f32.pop %v169
      %v172 = vsinq.f32.pop %v169
      %vm173 = vweird.f32 %v80
      %v174 = vadd.s32 %v170, 3
      %v175 = vand.u32 %v174, 3
      %vm176 = vcmp.lt.s32.totalorder %v175, 2
      %vm177 = vcmp.eq.s32.totalorder %v175, 0
      %v178 = vxor.u32 %v172, 2147483648
      %v179 = vsel %vm177, %v171, %v178
      %vm180 = vcmp.eq.s32.totalorder %v175, 2
      %v181 = vxor.u32 %v171, 2147483648
      %v182 = vsel %vm180, %v181, %v172
      %v183 = vsel %vm176, %v179, %v182
      %v184 = vsel %vm173, nan, %v183
      %v185 = vld [vmem:[#allocation3] sm:$0xff]
      %v186 = vld [vmem:[#allocation3 + $0x8] sm:$0xff]
      %v187 = vld [vmem:[#allocation3 + $0x10] sm:$0xff]
      %v188 = vld [vmem:[#allocation3 + $0x18] sm:$0xff]
      %v189 = vld [vmem:[%s4] sm:$0x1]
      %v191 = vlaneseq
      %v192 = vshrl.u32 %v191, 7
      %v193 = vsub.s32 0, %v192
      %v194 = vrot.slane %v189, %v193
      %vm196 = vcmask 261120
      %v198 = vsel %vm196, %v184, 0
      %200 = vmatprep.subr.mxu0 0.0
      %201 = vmatpush1.msra.mxu0 %v185
      %202 = vmatprep.subr.mxu0 0.0
      %203 = vmatpush1.msra.mxu0 %v186
      %204 = vmatprep.subr.mxu0 0.0
      %205 = vmatpush1.msra.mxu0 %v187
      %206 = vmatprep.subr.mxu0 0.0
      %207 = vmatpush1.msra.mxu0 %v188
      %208 = vmatprep.subr.mxu0 0.0
      %209 = vmatpush1.msra.mxu0 0.0
      %210 = vmatprep.subr.mxu0 0.0
      %211 = vmatpush1.msra.mxu0 0.0
      %212 = vmatprep.subr.mxu0 0.0
      %213 = vmatpush1.msra.mxu0 0.0
      %214 = vmatprep.subr.mxu0 0.0
      %215 = vmatpush1.msra.mxu0 0.0
      %216 = vmatprep.subr.mxu0 0.0
      %217 = vmatpush1.msra.mxu0 0.0
      %218 = vmatprep.subr.mxu0 0.0
      %219 = vmatpush1.msra.mxu0 0.0
      %220 = vmatprep.subr.mxu0 0.0
      %221 = vmatpush1.msra.mxu0 0.0
      %222 = vmatprep.subr.mxu0 0.0
      %223 = vmatpush1.msra.mxu0 0.0
      %224 = vmatprep.subr.mxu0 0.0
      %225 = vmatpush1.msra.mxu0 0.0
      %226 = vmatprep.subr.mxu0 0.0
      %227 = vmatpush1.msra.mxu0 0.0
      %228 = vmatprep.subr.mxu0 0.0
      %229 = vmatpush1.msra.mxu0 0.0
      %230 = vmatprep.subr.mxu0 0.0
      %231 = vmatpush1.msra.mxu0 0.0
      %232 = vmatprep.subr.mxu0 0.0
      %233 = vmatpush1.msra.mxu0 0.0
      %234 = vmatprep.subr.mxu0 0.0
      %235 = vmatpush1.msra.mxu0 0.0
      %236 = vmatprep.subr.mxu0 0.0
      %237 = vmatpush1.msra.mxu0 0.0
      %238 = vmatprep.subr.mxu0 0.0
      %239 = vmatpush1.msra.mxu0 0.0
      %240 = vmatprep.subr.mxu0 0.0
      %241 = vmatpush1.msra.mxu0 0.0
      %242 = vmatprep.subr.mxu0 0.0
      %243 = vmatpush1.msra.mxu0 0.0
      %244 = vmatprep.subr.mxu0 0.0
      %245 = vmatpush1.msra.mxu0 0.0
      %246 = vmatprep.subr.mxu0 0.0
      %247 = vmatpush1.msra.mxu0 0.0
      %248 = vmatprep.subr.mxu0 0.0
      %249 = vmatpush1.msra.mxu0 0.0
      %250 = vmatprep.subr.mxu0 0.0
      %251 = vmatpush1.msra.mxu0 0.0
      %252 = vmatprep.subr.mxu0 0.0
      %253 = vmatpush1.msra.mxu0 0.0
      %254 = vmatprep.subr.mxu0 0.0
      %255 = vmatpush1.msra.mxu0 0.0
      %256 = vmatprep.subr.mxu0 0.0
      %257 = vmatpush1.msra.mxu0 0.0
      %258 = vmatprep.subr.mxu0 0.0
      %259 = vmatpush1.msra.mxu0 0.0
      %260 = vmatprep.subr.mxu0 0.0
      %261 = vmatpush1.msra.mxu0 0.0
      %262 = vmatprep.subr.mxu0 0.0
      %263 = vmatpush1.msra.mxu0 0.0
      %264 = vmatprep.mubr.f32.mxu0 0.0
      %265 = vmatmul.mubr.f32.gmra.mrb[0].mxu0 %v198
      %v266 = vpop.f32.mrb[0].mxu0
      %v267 = vadd.f32 %v194, %v266
      %v268 = vpop.f32.mrb[0].mxu0
      %269 = vdwg.mxu0
      %v270 = vsub.f32 0.0, %v267
      %v271 = vmul.f32 %v270, 1.442695
      %v272 = vpow.pop %v271
      %v273 = vadd.f32 %v272, 1.0
      %v274 = vrcp.pop %v273
      %v275 = vmul.f32 %v267, %v274
      %276 = vst [vmem:[#allocation2] sm:$0xff] %v275
    $region41: #{tpu_custom_call.1} parent=1 // pred_fallthru
      _
    %v277 = vld [vmem:[#allocation2] sm:$0xff]
    %v278 = vld [vmem:[#allocation6] sm:$0xff]
    %v279 = vld [vmem:[#allocation6 + $0x8] sm:$0xff]
    %v280 = vld [vmem:[#allocation6 + $0x10] sm:$0xff]
    %v281 = vld [vmem:[#allocation6 + $0x18] sm:$0xff]
    %v282 = vld [vmem:[#allocation6 + $0x20] sm:$0xff]
    %v283 = vld [vmem:[#allocation6 + $0x28] sm:$0xff]
    %v284 = vld [vmem:[#allocation6 + $0x30] sm:$0xff]
    %v285 = vld [vmem:[#allocation6 + $0x38] sm:$0xff]
    %v286 = vld [vmem:[#allocation6 + $0x40] sm:$0xff]
    %v287 = vld [vmem:[#allocation6 + $0x48] sm:$0xff]
    %v288 = vld [vmem:[#allocation6 + $0x50] sm:$0xff]
    %v289 = vld [vmem:[#allocation6 + $0x58] sm:$0xff]
    %v290 = vld [vmem:[#allocation6 + $0x60] sm:$0xff]
    %v291 = vld [vmem:[#allocation6 + $0x68] sm:$0xff]
    %v292 = vld [vmem:[#allocation6 + $0x70] sm:$0xff]
    %v293 = vld [vmem:[#allocation6 + $0x78] sm:$0xff]
    %v294 = vld [vmem:[%s6] sm:$0x1]
    %v296 = vlaneseq
    %v297 = vshrl.u32 %v296, 7
    %v298 = vsub.s32 0, %v297
    %v299 = vrot.slane %v294, %v298
    %301 = vmatprep.subr.mxu0 0.0
    %302 = vmatpush1.msra.mxu0 %v278
    %303 = vmatprep.subr.mxu0 0.0
    %304 = vmatpush1.msra.mxu0 %v279
    %305 = vmatprep.subr.mxu0 0.0
    %306 = vmatpush1.msra.mxu0 %v280
    %307 = vmatprep.subr.mxu0 0.0
    %308 = vmatpush1.msra.mxu0 %v281
    %309 = vmatprep.subr.mxu0 0.0
    %310 = vmatpush1.msra.mxu0 %v282
    %311 = vmatprep.subr.mxu0 0.0
    %312 = vmatpush1.msra.mxu0 %v283
    %313 = vmatprep.subr.mxu0 0.0
    %314 = vmatpush1.msra.mxu0 %v284
    %315 = vmatprep.subr.mxu0 0.0
    %316 = vmatpush1.msra.mxu0 %v285
    %317 = vmatprep.subr.mxu0 0.0
    %318 = vmatpush1.msra.mxu0 %v286
    %319 = vmatprep.subr.mxu0 0.0
    %320 = vmatpush1.msra.mxu0 %v287
    %321 = vmatprep.subr.mxu0 0.0
    %322 = vmatpush1.msra.mxu0 %v288
    %323 = vmatprep.subr.mxu0 0.0
    %324 = vmatpush1.msra.mxu0 %v289
    %325 = vmatprep.subr.mxu0 0.0
    %326 = vmatpush1.msra.mxu0 %v290
    %327 = vmatprep.subr.mxu0 0.0
    %328 = vmatpush1.msra.mxu0 %v291
    %329 = vmatprep.subr.mxu0 0.0
    %330 = vmatpush1.msra.mxu0 %v292
    %331 = vmatprep.subr.mxu0 0.0
    %332 = vmatpush1.msra.mxu0 %v293
    %333 = vmatprep.subr.mxu0 0.0
    %334 = vmatpush1.msra.mxu0 0.0
    %335 = vmatprep.subr.mxu0 0.0
    %336 = vmatpush1.msra.mxu0 0.0
    %337 = vmatprep.subr.mxu0 0.0
    %338 = vmatpush1.msra.mxu0 0.0
    %339 = vmatprep.subr.mxu0 0.0
    %340 = vmatpush1.msra.mxu0 0.0
    %341 = vmatprep.subr.mxu0 0.0
    %342 = vmatpush1.msra.mxu0 0.0
    %343 = vmatprep.subr.mxu0 0.0
    %344 = vmatpush1.msra.mxu0 0.0
    %345 = vmatprep.subr.mxu0 0.0
    %346 = vmatpush1.msra.mxu0 0.0
    %347 = vmatprep.subr.mxu0 0.0
    %348 = vmatpush1.msra.mxu0 0.0
    %349 = vmatprep.subr.mxu0 0.0
    %350 = vmatpush1.msra.mxu0 0.0
    %351 = vmatprep.subr.mxu0 0.0
    %352 = vmatpush1.msra.mxu0 0.0
    %353 = vmatprep.subr.mxu0 0.0
    %354 = vmatpush1.msra.mxu0 0.0
    %355 = vmatprep.subr.mxu0 0.0
    %356 = vmatpush1.msra.mxu0 0.0
    %357 = vmatprep.subr.mxu0 0.0
    %358 = vmatpush1.msra.mxu0 0.0
    %359 = vmatprep.subr.mxu0 0.0
    %360 = vmatpush1.msra.mxu0 0.0
    %361 = vmatprep.subr.mxu0 0.0
    %362 = vmatpush1.msra.mxu0 0.0
    %363 = vmatprep.subr.mxu0 0.0
    %364 = vmatpush1.msra.mxu0 0.0
    %365 = vmatprep.mubr.f32.mxu0 0.0
    %366 = vmatmul.mubr.f32.gmra.mrb[0].mxu0 %v277
    %v367 = vpop.f32.mrb[0].mxu0
    %v368 = vadd.f32 %v299, %v367
    %v369 = vpop.f32.mrb[0].mxu0
    %370 = vdwg.mxu0
    %371 = vst [vmem:[#allocation8] sm:$0xff] %v368
    // Predicated region
    $region42: #{tpu_custom_call.1} parent=1 // pred_check
      _
    $region43: #{tpu_custom_call.1} parent=1 // pred_check_branch
      %373 = sbr.rel (0) target = $region45
    $region44: #{tpu_custom_call.1} parent=1 // pred_region
      %s375 = ssub.s32 128, 128
      %376 = vsyncadd [#allocation5], %s375
      %s378 = sshll.u32 [#allocation8], 4
      %s379 = int_to_ptr.vmem [resolvable:$true] %s378
      %381 = dma.vmem_to_hbm [thread:$0]  %s379, 128, %s7, [#allocation5]
    $region45: #{tpu_custom_call.1} parent=1 // pred_fallthru
      _
    // Predicated region
    $region46: #{tpu_custom_call.1} parent=1 // pred_check
      _
    $region47: #{tpu_custom_call.1} parent=1 // pred_check_branch
      %383 = sbr.rel (0) target = $region49
    $region48: #{tpu_custom_call.1} parent=1 // pred_region
      %384 = dma.done [#allocation5], 128
    $region49: #{tpu_custom_call.1} parent=1 // pred_fallthru
      _
    %385 = vsyncpa [#allocation4], 1
    %386 = vsyncpa [#allocation7], 1
    %387 = vsyncpa [#allocation5], 1

// kernel: tpu_custom_call.1
$region0: #{tpu_custom_call.1}
  #allocation0 [shape = 'u32[]', space=smem, size = 0x4, offset = 0x4, fixed_abs, tag = 'smem constant byte address 0x4 - core index']
  #allocation1 [shape = 'u32[144,128]{1,0:T(1,128)}', space=vmem, size = 0x12000, scoped, tag = 'internal scratch']
  #allocation2 [shape = 'f32[8,128]{1,0:T(8,128)}', space=vmem, size = 0x1000, scoped, tag = 'scratch operand']
  %s0 = inlined_call_operand.vmem [shape: f32[8,1], index: 0, kind: input, shape index: {}]
  %s1 = inlined_call_operand.vmem [shape: f32[1,32], index: 1, kind: input, shape index: {}]
  %s2 = inlined_call_operand.vmem [shape: f32[1,32], index: 2, kind: input, shape index: {}]
  %s3 = inlined_call_operand.hbm [shape: f32[32,128], index: 3, kind: input, shape index: {}]
  %s4 = inlined_call_operand.vmem [shape: f32[1,128], index: 4, kind: input, shape index: {}]
  %s5 = inlined_call_operand.hbm [shape: f32[128,128], index: 5, kind: input, shape index: {}]
  %s6 = inlined_call_operand.vmem [shape: f32[1,128], index: 6, kind: input, shape index: {}]
  %s7 = inlined_call_operand.hbm [shape: f32[8,128], index: 7, kind: output, shape index: {}]
  %s8 = sld [smem:[#allocation0]]
  $region50: #{tpu_custom_call.1} parent=0
    _
  %s10 = ssub.s32 1, %s8
  %s11 = scalar_select 0, %s10, %s8
  $region1: #{tpu_custom_call.1} parent=0
    #allocation3 [shape = 'u8[16384]{0}', space=vmem, size = 0x4000, scoped, tag = 'input window, operand 3, single buffered']
    #allocation4 [shape = 's32[1]{0}', space=sflag, size = 0x4, scoped, tag = 'scoped memory for tpu_custom_call.1']
    #allocation5 [shape = 's32[1]{0}', space=sflag, size = 0x4, scoped, tag = 'scoped memory for tpu_custom_call.1']
    #allocation6 [shape = 'u8[65536]{0}', space=vmem, size = 0x10000, scoped, tag = 'input window, operand 5, single buffered']
    #allocation7 [shape = 's32[1]{0}', space=sflag, size = 0x4, scoped, tag = 'scoped memory for tpu_custom_call.1']
    #allocation8 [shape = 'u8[4096]{0}', space=vmem, size = 0x1000, scoped, tag = 'output window, operand 0, single buffered']
    %12 = vsyncpa [#allocation4], 0
    %13 = vsyncpa [#allocation7], 0
    %14 = vsyncpa [#allocation5], 0
    // Predicated region
    $region2: #{tpu_custom_call.1} parent=1 // pred_check
      _
    $region3: #{tpu_custom_call.1} parent=1 // pred_check_branch
      %16 = sbr.rel (0) target = $region5
    $region4: #{tpu_custom_call.1} parent=1 // pred_region
      _
    $region5: #{tpu_custom_call.1} parent=1 // pred_fallthru
      _
    // Predicated region
    $region6: #{tpu_custom_call.1} parent=1 // pred_check
      _
    $region7: #{tpu_custom_call.1} parent=1 // pred_check_branch
      %18 = sbr.rel (0) target = $region9
    $region8: #{tpu_custom_call.1} parent=1 // pred_region
      _
    $region9: #{tpu_custom_call.1} parent=1 // pred_fallthru
      _
    // Predicated region
    $region10: #{tpu_custom_call.1} parent=1 // pred_check
      _
    $region11: #{tpu_custom_call.1} parent=1 // pred_check_branch
      %20 = sbr.rel (0) target = $region13
    $region12: #{tpu_custom_call.1} parent=1 // pred_region
      _
    $region13: #{tpu_custom_call.1} parent=1 // pred_fallthru
      _
    // Predicated region
    $region14: #{tpu_custom_call.1} parent=1 // pred_check
      _
    $region15: #{tpu_custom_call.1} parent=1 // pred_check_branch
      %22 = sbr.rel (0) target = $region17
    $region16: #{tpu_custom_call.1} parent=1 // pred_region
      %s24 = ssub.s32 512, 512
      %25 = vsyncadd [#allocation4], %s24
      %s26 = sshll.u32 [#allocation3], 4
      %s27 = int_to_ptr.vmem [resolvable:$true] %s26
      %32 = dma.hbm_to_vmem [thread:$0]  %s3, 512, %s27, [#allocation4], 128, 128, 8
    $region17: #{tpu_custom_call.1} parent=1 // pred_fallthru
      _
    // Predicated region
    $region18: #{tpu_custom_call.1} parent=1 // pred_check
      _
    $region19: #{tpu_custom_call.1} parent=1 // pred_check_branch
      %34 = sbr.rel (0) target = $region21
    $region20: #{tpu_custom_call.1} parent=1 // pred_region
      _
    $region21: #{tpu_custom_call.1} parent=1 // pred_fallthru
      _
    // Predicated region
    $region22: #{tpu_custom_call.1} parent=1 // pred_check
      _
    $region23: #{tpu_custom_call.1} parent=1 // pred_check_branch
      %36 = sbr.rel (0) target = $region25
    $region24: #{tpu_custom_call.1} parent=1 // pred_region
      %s38 = ssub.s32 2048, 2048
      %39 = vsyncadd [#allocation7], %s38
      %s40 = sshll.u32 [#allocation6], 4
      %s41 = int_to_ptr.vmem [resolvable:$true] %s40
      %46 = dma.hbm_to_vmem [thread:$0]  %s5, 2048, %s41, [#allocation7], 128, 128, 8
    $region25: #{tpu_custom_call.1} parent=1 // pred_fallthru
      _
    // Predicated region
    $region26: #{tpu_custom_call.1} parent=1 // pred_check
      _
    $region27: #{tpu_custom_call.1} parent=1 // pred_check_branch
      %48 = sbr.rel (0) target = $region29
    $region28: #{tpu_custom_call.1} parent=1 // pred_region
      _
    $region29: #{tpu_custom_call.1} parent=1 // pred_fallthru
      _
    // Predicated region
    $region30: #{tpu_custom_call.1} parent=1 // pred_check
      _
    $region31: #{tpu_custom_call.1} parent=1 // pred_check_branch
      %50 = sbr.rel (0) target = $region33
    $region32: #{tpu_custom_call.1} parent=1 // pred_region
      %51 = dma.done [#allocation4], 512
    $region33: #{tpu_custom_call.1} parent=1 // pred_fallthru
      _
    // Predicated region
    $region34: #{tpu_custom_call.1} parent=1 // pred_check
      _
    $region35: #{tpu_custom_call.1} parent=1 // pred_check_branch
      %53 = sbr.rel (0) target = $region37
    $region36: #{tpu_custom_call.1} parent=1 // pred_region
      %54 = dma.done [#allocation7], 2048
    $region37: #{tpu_custom_call.1} parent=1 // pred_fallthru
      _
    %p55 = scmp.eq.s32.totalorder 0, 0
    // Predicated region
    $region38: #{tpu_custom_call.1} parent=1 // pred_check
      %p56 = pneg %p55
    $region39: #{tpu_custom_call.1} parent=1 // pred_check_branch
      %58 = sbr.rel (%p56) target = $region41
    $region40: #{tpu_custom_call.1} parent=1 // pred_region
      %v59 = vld [vmem:[%s0] sm:$0xff]
      %v60 = vld [vmem:[%s1] sm:$0x1]
      %62 = vset.pattern.permute.xlu0 0
      %63 = vperm.xlu0 %62, %v59
      %v64 = vpop.permute.xlu0 %63
      %v67 = vlaneseq
      %v68 = vshrl.u32 %v67, 7
      %v69 = vsub.s32 0, %v68
      %v70 = vrot.slane %v60, %v69
      %v72 = vmul.f32 %v64, %v70
      %v73 = vld [vmem:[%s2] sm:$0x1]
      %v75 = vlaneseq
      %v76 = vshrl.u32 %v75, 7
      %v77 = vsub.s32 0, %v76
      %v78 = vrot.slane %v73, %v77
      %v80 = vadd.f32 %v72, %v78
      %v81 = vand.u32 2147483647, %v80
      %vm82 = vcmp.le.f32.partialorder %v81, 0.7853982
      %vm83 = vcmp.lt.s32.totalorder %v80, 0
      %v84 = vand.u32 %v80, 2139095040
      %v85 = vshrl.u32 %v84, 23
      %v86 = vsub.s32 %v85, 127
      %v87 = vand.u32 2147483647, %v80
      %v88 = vand.u32 %v87, 8388607
      %v89 = vor.u32 %v88, 8388608
      %v90 = vsub.s32 0, %v89
      %v91 = vadd.s32 %v86, 1
      %vm92 = vcmp.gt.s32.totalorder %v91, 0
      %v93 = vsel %vm92, %v91, 0
      %v94 = vshrl.u32 %v93, 5
      %v95 = vand.u32 %v93, 31
      %v96 = vsub.s32 32, %v95
      %v97 = vshrl.u32 683565275, %v96
      %v98 = vshll.u32 683565275, %v95
      %v99 = vshrl.u32 2475754826, %v96
      %v100 = vor.u32 %v98, %v99
      %v101 = vshll.u32 2475754826, %v95
      %v102 = vshrl.u32 2131351028, %v96
      %v103 = vor.u32 %v101, %v102
      %v104 = vshll.u32 2131351028, %v95
      %v105 = vshrl.u32 2102212464, %v96
      %v106 = vor.u32 %v104, %v105
      %v107 = vshll.u32 2102212464, %v95
      %v108 = vshrl.u32 920167782, %v96
      %v109 = vor.u32 %v107, %v108
      %v110 = vshll.u32 920167782, %v95
      %v111 = vshrl.u32 1326507024, %v96
      %v112 = vor.u32 %v110, %v111
      %vm113 = vcmp.lt.s32.totalorder %v94, 1
      %vm114 = vcmp.lt.s32.totalorder %v94, 2
      %vm115 = vcmp.lt.s32.totalorder %v94, 3
      %vm116 = vcmp.lt.s32.totalorder %v94, 4
      %v117 = vsel %vm113, %v97, %v100
      %v118 = vsel %vm116, %v106, 2102212464
      %v119 = vsel %vm115, %v103, %v118
      %v120 = vsel %vm114, %v117, %v119
      %v121 = vsel %vm113, %v100, %v103
      %v122 = vsel %vm116, %v109, 920167782
      %v123 = vsel %vm115, %v106, %v122
      %v124 = vsel %vm114, %v121, %v123
      %v125 = vsel %vm113, %v103, %v106
      %v126 = vsel %vm116, %v112, 1326507024
      %v127 = vsel %vm115, %v109, %v126
      %v128 = vsel %vm114, %v125, %v127
      %v129 = vshll.u32 %v89, 8
      %v130 = vmul.u32.u64.compose %v129, %v128
      %v131 = vextract.low.u32 %v130
      %v132 = vextract.high.u32 %v130
      %v133 = vmul.u32.u64.compose %v129, %v124
      %v134 = vextract.low.u32 %v133
      %v135 = vextract.high.u32 %v133
      %v136 = vmul.u32 %v129, %v120
      %v137 = vadd.s32 %v132, %v134
      %vm138 = vc.u32 %v132, %v134
      %v139 = vadd.s32 %v135, 1
      %v140 = vsel %vm138, %v139, %v135
      %v141 = vadd.s32 %v136, %v140
      %v142 = vadd.s32 %v141, 536870912
      %v143 = vshrl.u32 %v142, 30
      %v144 = vshll.u32 %v143, 30
      %v145 = vsub.s32 %v141, %v144
      %vm146 = vcmp.lt.s32.totalorder %v145, 0
      %v147 = vsub.s32 0, %v145
      %v148 = vsel %vm146, %v147, %v145
      %v149 = vclz %v148
      %v150 = vsub.s32 %v149, 2
      %vm151 = vcmp.gt.s32.totalorder 0, %v150
      %v152 = vsel %vm151, 0, %v150
      %v153 = vsub.s32 32, %v152
      %v154 = vshll.u32 %v145, %v152
      %v155 = vshrl.u32 %v137, %v153
      %v156 = vor.u32 %v154, %v155
      %v157 = vsub.s32 4294967266, %v152
      %v158 = vadd.s32 %v157, 127
      %v159 = vshll.u32 %v158, 23
      %v160 = vor.u32 4788187, %v159
      %v161 = vand.u32 2147483647, %v160
      %v163 = vcvt.s32.f32 %v156
      %v164 = vmul.f32 %v163, %v161
      %v165 = vxor.u32 %v164, 2147483648
      %v166 = vsel %vm83, %v165, %v164
      %v167 = vsub.s32 4, %v143
      %v168 = vsel %vm83, %v167, %v143
      %v169 = vsel %vm82, %v80, %v166
      %v170 = vsel %vm82, 0, %v168
      %v171 = vcosq.f32.pop %v169
      %v172 = vsinq.f32.pop %v169
      %vm173 = vweird.f32 %v80
      %v174 = vadd.s32 %v170, 3
      %v175 = vand.u32 %v174, 3
      %vm176 = vcmp.lt.s32.totalorder %v175, 2
      %vm177 = vcmp.eq.s32.totalorder %v175, 0
      %v178 = vxor.u32 %v172, 2147483648
      %v179 = vsel %vm177, %v171, %v178
      %vm180 = vcmp.eq.s32.totalorder %v175, 2
      %v181 = vxor.u32 %v171, 2147483648
      %v182 = vsel %vm180, %v181, %v172
      %v183 = vsel %vm176, %v179, %v182
      %v184 = vsel %vm173, nan, %v183
      %v185 = vld [vmem:[#allocation3] sm:$0xff]
      %v186 = vld [vmem:[#allocation3 + $0x8] sm:$0xff]
      %v187 = vld [vmem:[#allocation3 + $0x10] sm:$0xff]
      %v188 = vld [vmem:[#allocation3 + $0x18] sm:$0xff]
      %v189 = vld [vmem:[%s4] sm:$0x1]
      %v191 = vlaneseq
      %v192 = vshrl.u32 %v191, 7
      %v193 = vsub.s32 0, %v192
      %v194 = vrot.slane %v189, %v193
      %vm196 = vcmask 261120
      %v198 = vsel %vm196, %v184, 0
      %200 = vmatprep.subr.mxu0 0.0
      %201 = vmatpush1.msra.mxu0 %v185
      %202 = vmatprep.subr.mxu0 0.0
      %203 = vmatpush1.msra.mxu0 %v186
      %204 = vmatprep.subr.mxu0 0.0
      %205 = vmatpush1.msra.mxu0 %v187
      %206 = vmatprep.subr.mxu0 0.0
      %207 = vmatpush1.msra.mxu0 %v188
      %208 = vmatprep.subr.mxu0 0.0
      %209 = vmatpush1.msra.mxu0 0.0
      %210 = vmatprep.subr.mxu0 0.0
      %211 = vmatpush1.msra.mxu0 0.0
      %212 = vmatprep.subr.mxu0 0.0
      %213 = vmatpush1.msra.mxu0 0.0
      %214 = vmatprep.subr.mxu0 0.0
      %215 = vmatpush1.msra.mxu0 0.0
      %216 = vmatprep.subr.mxu0 0.0
      %217 = vmatpush1.msra.mxu0 0.0
      %218 = vmatprep.subr.mxu0 0.0
      %219 = vmatpush1.msra.mxu0 0.0
      %220 = vmatprep.subr.mxu0 0.0
      %221 = vmatpush1.msra.mxu0 0.0
      %222 = vmatprep.subr.mxu0 0.0
      %223 = vmatpush1.msra.mxu0 0.0
      %224 = vmatprep.subr.mxu0 0.0
      %225 = vmatpush1.msra.mxu0 0.0
      %226 = vmatprep.subr.mxu0 0.0
      %227 = vmatpush1.msra.mxu0 0.0
      %228 = vmatprep.subr.mxu0 0.0
      %229 = vmatpush1.msra.mxu0 0.0
      %230 = vmatprep.subr.mxu0 0.0
      %231 = vmatpush1.msra.mxu0 0.0
      %232 = vmatprep.subr.mxu0 0.0
      %233 = vmatpush1.msra.mxu0 0.0
      %234 = vmatprep.subr.mxu0 0.0
      %235 = vmatpush1.msra.mxu0 0.0
      %236 = vmatprep.subr.mxu0 0.0
      %237 = vmatpush1.msra.mxu0 0.0
      %238 = vmatprep.subr.mxu0 0.0
      %239 = vmatpush1.msra.mxu0 0.0
      %240 = vmatprep.subr.mxu0 0.0
      %241 = vmatpush1.msra.mxu0 0.0
      %242 = vmatprep.subr.mxu0 0.0
      %243 = vmatpush1.msra.mxu0 0.0
      %244 = vmatprep.subr.mxu0 0.0
      %245 = vmatpush1.msra.mxu0 0.0
      %246 = vmatprep.subr.mxu0 0.0
      %247 = vmatpush1.msra.mxu0 0.0
      %248 = vmatprep.subr.mxu0 0.0
      %249 = vmatpush1.msra.mxu0 0.0
      %250 = vmatprep.subr.mxu0 0.0
      %251 = vmatpush1.msra.mxu0 0.0
      %252 = vmatprep.subr.mxu0 0.0
      %253 = vmatpush1.msra.mxu0 0.0
      %254 = vmatprep.subr.mxu0 0.0
      %255 = vmatpush1.msra.mxu0 0.0
      %256 = vmatprep.subr.mxu0 0.0
      %257 = vmatpush1.msra.mxu0 0.0
      %258 = vmatprep.subr.mxu0 0.0
      %259 = vmatpush1.msra.mxu0 0.0
      %260 = vmatprep.subr.mxu0 0.0
      %261 = vmatpush1.msra.mxu0 0.0
      %262 = vmatprep.subr.mxu0 0.0
      %263 = vmatpush1.msra.mxu0 0.0
      %264 = vmatprep.mubr.f32.mxu0 0.0
      %265 = vmatmul.mubr.f32.gmra.mrb[0].mxu0 %v198
      %v266 = vpop.f32.mrb[0].mxu0
      %v267 = vadd.f32 %v194, %v266
      %v268 = vpop.f32.mrb[0].mxu0
      %269 = vdwg.mxu0
      %v270 = vsub.f32 0.0, %v267
      %v271 = vmul.f32 %v270, 1.442695
      %v272 = vpow.pop %v271
      %v273 = vadd.f32 %v272, 1.0
      %v274 = vrcp.pop %v273
      %v275 = vmul.f32 %v267, %v274
      %276 = vst [vmem:[#allocation2] sm:$0xff] %v275
    $region41: #{tpu_custom_call.1} parent=1 // pred_fallthru
      _
    %v277 = vld [vmem:[#allocation2] sm:$0xff]
    %v278 = vld [vmem:[#allocation6] sm:$0xff]
    %v279 = vld [vmem:[#allocation6 + $0x8] sm:$0xff]
    %v280 = vld [vmem:[#allocation6 + $0x10] sm:$0xff]
    %v281 = vld [vmem:[#allocation6 + $0x18] sm:$0xff]
    %v282 = vld [vmem:[#allocation6 + $0x20] sm:$0xff]
    %v283 = vld [vmem:[#allocation6 + $0x28] sm:$0xff]
    %v284 = vld [vmem:[#allocation6 + $0x30] sm:$0xff]
    %v285 = vld [vmem:[#allocation6 + $0x38] sm:$0xff]
    %v286 = vld [vmem:[#allocation6 + $0x40] sm:$0xff]
    %v287 = vld [vmem:[#allocation6 + $0x48] sm:$0xff]
    %v288 = vld [vmem:[#allocation6 + $0x50] sm:$0xff]
    %v289 = vld [vmem:[#allocation6 + $0x58] sm:$0xff]
    %v290 = vld [vmem:[#allocation6 + $0x60] sm:$0xff]
    %v291 = vld [vmem:[#allocation6 + $0x68] sm:$0xff]
    %v292 = vld [vmem:[#allocation6 + $0x70] sm:$0xff]
    %v293 = vld [vmem:[#allocation6 + $0x78] sm:$0xff]
    %v294 = vld [vmem:[%s6] sm:$0x1]
    %v296 = vlaneseq
    %v297 = vshrl.u32 %v296, 7
    %v298 = vsub.s32 0, %v297
    %v299 = vrot.slane %v294, %v298
    %301 = vmatprep.subr.mxu0 0.0
    %302 = vmatpush1.msra.mxu0 %v278
    %303 = vmatprep.subr.mxu0 0.0
    %304 = vmatpush1.msra.mxu0 %v279
    %305 = vmatprep.subr.mxu0 0.0
    %306 = vmatpush1.msra.mxu0 %v280
    %307 = vmatprep.subr.mxu0 0.0
    %308 = vmatpush1.msra.mxu0 %v281
    %309 = vmatprep.subr.mxu0 0.0
    %310 = vmatpush1.msra.mxu0 %v282
    %311 = vmatprep.subr.mxu0 0.0
    %312 = vmatpush1.msra.mxu0 %v283
    %313 = vmatprep.subr.mxu0 0.0
    %314 = vmatpush1.msra.mxu0 %v284
    %315 = vmatprep.subr.mxu0 0.0
    %316 = vmatpush1.msra.mxu0 %v285
    %317 = vmatprep.subr.mxu0 0.0
    %318 = vmatpush1.msra.mxu0 %v286
    %319 = vmatprep.subr.mxu0 0.0
    %320 = vmatpush1.msra.mxu0 %v287
    %321 = vmatprep.subr.mxu0 0.0
    %322 = vmatpush1.msra.mxu0 %v288
    %323 = vmatprep.subr.mxu0 0.0
    %324 = vmatpush1.msra.mxu0 %v289
    %325 = vmatprep.subr.mxu0 0.0
    %326 = vmatpush1.msra.mxu0 %v290
    %327 = vmatprep.subr.mxu0 0.0
    %328 = vmatpush1.msra.mxu0 %v291
    %329 = vmatprep.subr.mxu0 0.0
    %330 = vmatpush1.msra.mxu0 %v292
    %331 = vmatprep.subr.mxu0 0.0
    %332 = vmatpush1.msra.mxu0 %v293
    %333 = vmatprep.subr.mxu0 0.0
    %334 = vmatpush1.msra.mxu0 0.0
    %335 = vmatprep.subr.mxu0 0.0
    %336 = vmatpush1.msra.mxu0 0.0
    %337 = vmatprep.subr.mxu0 0.0
    %338 = vmatpush1.msra.mxu0 0.0
    %339 = vmatprep.subr.mxu0 0.0
    %340 = vmatpush1.msra.mxu0 0.0
    %341 = vmatprep.subr.mxu0 0.0
    %342 = vmatpush1.msra.mxu0 0.0
    %343 = vmatprep.subr.mxu0 0.0
    %344 = vmatpush1.msra.mxu0 0.0
    %345 = vmatprep.subr.mxu0 0.0
    %346 = vmatpush1.msra.mxu0 0.0
    %347 = vmatprep.subr.mxu0 0.0
    %348 = vmatpush1.msra.mxu0 0.0
    %349 = vmatprep.subr.mxu0 0.0
    %350 = vmatpush1.msra.mxu0 0.0
    %351 = vmatprep.subr.mxu0 0.0
    %352 = vmatpush1.msra.mxu0 0.0
    %353 = vmatprep.subr.mxu0 0.0
    %354 = vmatpush1.msra.mxu0 0.0
    %355 = vmatprep.subr.mxu0 0.0
    %356 = vmatpush1.msra.mxu0 0.0
    %357 = vmatprep.subr.mxu0 0.0
    %358 = vmatpush1.msra.mxu0 0.0
    %359 = vmatprep.subr.mxu0 0.0
    %360 = vmatpush1.msra.mxu0 0.0
    %361 = vmatprep.subr.mxu0 0.0
    %362 = vmatpush1.msra.mxu0 0.0
    %363 = vmatprep.subr.mxu0 0.0
    %364 = vmatpush1.msra.mxu0 0.0
    %365 = vmatprep.mubr.f32.mxu0 0.0
    %366 = vmatmul.mubr.f32.gmra.mrb[0].mxu0 %v277
    %v367 = vpop.f32.mrb[0].mxu0
    %v368 = vadd.f32 %v299, %v367
    %v369 = vpop.f32.mrb[0].mxu0
    %370 = vdwg.mxu0
    %371 = vst [vmem:[#allocation8] sm:$0xff] %v368
    // Predicated region
    $region42: #{tpu_custom_call.1} parent=1 // pred_check
      _
    $region43: #{tpu_custom_call.1} parent=1 // pred_check_branch
      %373 = sbr.rel (0) target = $region45
    $region44: #{tpu_custom_call.1} parent=1 // pred_region
      %s375 = ssub.s32 128, 128
      %376 = vsyncadd [#allocation5], %s375
      %s378 = sshll.u32 [#allocation8], 4
      %s379 = int_to_ptr.vmem [resolvable:$true] %s378
      %381 = dma.vmem_to_hbm [thread:$0]  %s379, 128, %s7, [#allocation5]
    $region45: #{tpu_custom_call.1} parent=1 // pred_fallthru
      _
    // Predicated region
    $region46: #{tpu_custom_call.1} parent=1 // pred_check
      _
    $region47: #{tpu_custom_call.1} parent=1 // pred_check_branch
      %383 = sbr.rel (0) target = $region49
    $region48: #{tpu_custom_call.1} parent=1 // pred_region
      %384 = dma.done [#allocation5], 128
    $region49: #{tpu_custom_call.1} parent=1 // pred_fallthru
      _
    %385 = vsyncpa [#allocation4], 1
    %386 = vsyncpa [#allocation7], 1
    %387 = vsyncpa [#allocation5], 1

</llo_original>
